<compile_context>
chip_gen: v7x
topology: tpu7x:2x2x1
jax: 0.10.0
libtpu: 0.0.40
codegen_flags: <defaults>
</compile_context>

<pallas_src>
import functools
import math

import jax
import jax.numpy as jnp
from jax.experimental import pallas as pl
from jax.experimental.pallas import tpu as pltpu

_EPS = 1e-12        # torch.nn.functional.normalize eps
_NEG_INF = -1e30    # finite "minus infinity" used to mask padded columns


def _round_up(x, m):
    return -(-x // m) * m


@functools.lru_cache(maxsize=None)
def _vmem_capacity_bytes():
    """Physical VMEM per core; conservative fallback if the query fails."""
    try:
        return int(pltpu.get_tpu_info().vmem_capacity_bytes)
    except Exception:       # pragma: no cover - query unavailable
        return 64 << 20     # v7x-sized lower bound: safe on every generation


def _vmem_limit(est_bytes):
    """Explicit scoped-VMEM request: 2x estimate, capped 25% below physical."""
    cap = (_vmem_capacity_bytes() * 3) // 4
    return int(min(max(2 * est_bytes, 32 << 20), cap))


def _choose_tiles(n, d, in_isz, mat_isz, block_rows=None, block_cols=None):
    """Pick (n_pad, tm, tn): padded N, anchor-row tile, negatives-column tile."""
    n8 = _round_up(max(int(n), 1), 8)

    if block_rows is not None:
        tm = int(block_rows)
        if tm % 8:
            raise ValueError("block_rows must be a multiple of 8")
    else:
        # 256 rows fills the 256x256 MXU on v6e/v7x and is two passes of the
        # 128x128 MXU on v5e; shrink only when the (TM, d) operands get large.
        tm = 256
        while tm > 8 and tm * d * (2 * in_isz + mat_isz + 4) > (10 << 20):
            tm //= 2
        while tm > n8:
            tm //= 2

    if block_cols is not None:
        tn = int(block_cols)
        if tn % 8:
            raise ValueError("block_cols must be a multiple of 8")
    else:
        single = _round_up(n8, tm)
        # Single column tile while the (d, TN) b^T block stays small;
        # otherwise 512-wide (128-aligned) column tiles with online softmax.
        if n8 <= 2048 and single * d * 2 * mat_isz <= (8 << 20):
            tn = single
        else:
            tn = max(tm, 512)

    n_pad = _round_up(n8, math.lcm(tm, tn))
    if tn != n_pad and tn % 128:
        raise ValueError("block_cols must be a multiple of 128 or cover all of N")
    return n_pad, tm, tn


def _choose_norm_tile(n_pad, d, in_isz, mat_isz):
    """Row-tile for the normalize+transpose pass (must divide n_pad and keep
    the transposed (d, TB) output block 128-lane aligned unless TB == n_pad)."""
    per_row = d * (2 * in_isz + 2 * mat_isz + 4)
    budget = 12 << 20
    cands = [c for c in (1024, 512, 256, 128) if c < n_pad and n_pad % c == 0]
    if not cands or n_pad * per_row <= budget:
        return n_pad
    for c in cands:
        if c * per_row <= budget:
            return c
    return cands[-1]


# --------------------------------------------------------------------------
# Kernel 1: row-wise L2 normalize b and store it transposed as (G, d, N).
# --------------------------------------------------------------------------
def _l2norm_t_kernel(b_ref, btn_ref):
    x = b_ref[...].astype(jnp.float32)                                 # (TB, d)
    inv = 1.0 / jnp.maximum(
        jnp.sqrt(jnp.sum(x * x, axis=-1, keepdims=True)), _EPS)
    btn_ref[...] = jnp.transpose(x * inv).astype(btn_ref.dtype)       # (d, TB)


def _l2_normalize_t(b, out_dtype, tb):
    """(G, N, d) -> row-L2-normalized, transposed (G, d, N) in out_dtype."""
    g, n, d = b.shape
    in_isz = jnp.dtype(b.dtype).itemsize
    out_isz = jnp.dtype(out_dtype).itemsize
    est = tb * d * (2 * in_isz + 2 * out_isz + 4)
    grid_spec = pltpu.PrefetchScalarGridSpec(
        num_scalar_prefetch=0,
        grid=(g, n // tb),
        in_specs=[pl.BlockSpec((None, tb, d), lambda gi, i: (gi, i, 0))],
        out_specs=pl.BlockSpec((None, d, tb), lambda gi, i: (gi, 0, i)),
    )
    return pl.pallas_call(
        _l2norm_t_kernel,
        out_shape=jax.ShapeDtypeStruct((g, d, n), out_dtype),
        grid_spec=grid_spec,
        compiler_params=pltpu.CompilerParams(
            dimension_semantics=("parallel", "parallel"),
            vmem_limit_bytes=_vmem_limit(est)),
    )(b)


# --------------------------------------------------------------------------
# Kernel 2: row-tiled anchors x column-tiled negatives, online softmax.
# --------------------------------------------------------------------------
def _mnrl_kernel(a_ref, btn_ref, loss_ref, corr_ref,
                 an_sc, m_sc, l_sc, diag_sc, idx_sc, *,
                 scale, tm, tn, n_real, n_pad):
    i = pl.program_id(1)          # anchor row tile
    j = pl.program_id(2)          # negatives column tile
    col0 = j * tn

    @pl.when(j == 0)
    def _init():
        # Normalize + fold `scale` into this anchor row tile once; reuse over j.
        a = a_ref[...].astype(jnp.float32)                             # (TM, d)
        inv = scale / jnp.maximum(
            jnp.sqrt(jnp.sum(a * a, axis=-1, keepdims=True)), _EPS)
        an_sc[...] = (a * inv).astype(an_sc.dtype)
        m_sc[...] = jnp.full_like(m_sc, _NEG_INF)
        l_sc[...] = jnp.zeros_like(l_sc)
        diag_sc[...] = jnp.zeros_like(diag_sc)
        idx_sc[...] = jnp.full_like(idx_sc, n_pad)                     # sentinel

    # (TM, d) @ (d, TN) block of scaled cosine-similarity scores on the MXU.
    scores = jnp.dot(an_sc[...], btn_ref[...],
                     preferred_element_type=jnp.float32)               # (TM, TN)

    col_g = jax.lax.broadcasted_iota(jnp.int32, (tm, tn), 1) + col0    # global col
    if n_real != n_pad:            # static: only emitted when padding exists
        scores = jnp.where(col_g < n_real, scores, _NEG_INF)

    # Positive-pair score: diagonal entries of this block (present only when
    # the column tile overlaps this row tile's [i*TM, i*TM + TM) band).
    @pl.when(jnp.logical_and(col0 < (i + 1) * tm, col0 + tn > i * tm))
    def _grab_diag():
        row_g = jax.lax.broadcasted_iota(jnp.int32, (tm, tn), 0) + i * tm
        diag_sc[...] += jnp.sum(jnp.where(col_g == row_g, scores, 0.0),
                                axis=-1, keepdims=True)

    # Online softmax + running first-index argmax (torch tie semantics).
    m_t = jnp.max(scores, axis=-1, keepdims=True)                      # (TM, 1)
    idx_t = jnp.min(jnp.where(scores == m_t, col_g, n_pad),
                    axis=-1, keepdims=True)                            # (TM, 1)
    m_old = m_sc[...]
    m_new = jnp.maximum(m_old, m_t)
    l_sc[...] = (l_sc[...] * jnp.exp(m_old - m_new)
                 + jnp.sum(jnp.exp(scores - m_new), axis=-1, keepdims=True))
    idx_sc[...] = jnp.where(m_t > m_old, idx_t, idx_sc[...])           # tie -> earlier
    m_sc[...] = m_new

    @pl.when(j == pl.num_programs(2) - 1)
    def _finalize():
        lse = m_sc[...] + jnp.log(l_sc[...])                           # (TM, 1)
        labels = jax.lax.broadcasted_iota(jnp.int32, (tm, 1), 0) + i * tm
        loss_ref[...] = lse - diag_sc[...]
        corr_ref[...] = (idx_sc[...] == labels).astype(jnp.float32)


def _mnrl_grouped(a, b, scale, block_rows=None, block_cols=None,
                  matmul_dtype=None):
    """Per-group loss / accuracy.  a, b: (G, N, d).  Returns ((G,), (G,))."""
    g, n, d = a.shape
    in_dtype = jnp.dtype(a.dtype)
    mat_dtype = jnp.dtype(matmul_dtype) if matmul_dtype is not None else in_dtype
    in_isz = in_dtype.itemsize
    mat_isz = mat_dtype.itemsize

    n_pad, tm, tn = _choose_tiles(n, d, in_isz, mat_isz, block_rows, block_cols)
    if n_pad != n:
        a = jnp.pad(a, ((0, 0), (0, n_pad - n), (0, 0)))
        b = jnp.pad(b, ((0, 0), (0, n_pad - n), (0, 0)))

    # Normalize b once and emit it already transposed (and in the matmul dtype).
    tb = _choose_norm_tile(n_pad, d, in_isz, mat_isz)
    btn = _l2_normalize_t(b, mat_dtype, tb)                            # (G, d, N_pad)

    n_row = n_pad // tm
    n_col = n_pad // tn

    est = (2 * tm * d * in_isz          # anchor block (double-buffered)
           + 2 * d * tn * mat_isz       # b^T column block (double-buffered)
           + tm * d * mat_isz           # normalized-anchor scratch
           + 6 * tm * tn * 4            # scores + softmax/argmax temporaries
           + 32 * tm * 4)               # running stats + tiny output blocks

    kernel = functools.partial(
        _mnrl_kernel, scale=float(scale), tm=tm, tn=tn, n_real=n, n_pad=n_pad)

    grid_spec = pltpu.PrefetchScalarGridSpec(
        num_scalar_prefetch=0,
        grid=(g, n_row, n_col),
        in_specs=[
            pl.BlockSpec((None, tm, d), lambda gi, i, j: (gi, i, 0)),  # anchors
            pl.BlockSpec((None, d, tn), lambda gi, i, j: (gi, 0, j)),  # b^T cols
        ],
        out_specs=(
            pl.BlockSpec((None, tm, 1), lambda gi, i, j: (gi, i, 0)),
            pl.BlockSpec((None, tm, 1), lambda gi, i, j: (gi, i, 0)),
        ),
        scratch_shapes=[
            pltpu.VMEM((tm, d), mat_dtype),     # normalized, scaled anchors
            pltpu.VMEM((tm, 1), jnp.float32),   # running max
            pltpu.VMEM((tm, 1), jnp.float32),   # running sum(exp)
            pltpu.VMEM((tm, 1), jnp.float32),   # positive-pair (diagonal) score
            pltpu.VMEM((tm, 1), jnp.int32),     # running first-argmax index
        ],
    )
    loss_rows, corr_rows = pl.pallas_call(
        kernel,
        out_shape=(jax.ShapeDtypeStruct((g, n_pad, 1), jnp.float32),
                   jax.ShapeDtypeStruct((g, n_pad, 1), jnp.float32)),
        grid_spec=grid_spec,
        compiler_params=pltpu.CompilerParams(
            dimension_semantics=("parallel", "parallel", "arbitrary"),
            vmem_limit_bytes=_vmem_limit(est)),
    )(a, btn)

    loss_rows = loss_rows[..., 0][:, :n]                               # drop padding
    corr_rows = corr_rows[..., 0][:, :n]
    return jnp.mean(loss_rows, axis=-1), jnp.mean(corr_rows, axis=-1)


@functools.partial(jax.jit, static_argnames=(
    "loss_type", "scale", "block_rows", "block_cols", "matmul_dtype"))
def multiple_negatives_ranking_loss(embeddings_a, embeddings_b, loss_type,
                                    scale=20.0, block_rows=None,
                                    block_cols=None, matmul_dtype=None):
    """JAX/Pallas equivalent of MultipleNegativesRankingLoss.forward.

    embeddings_a, embeddings_b: (bsz, T, d). Returns (loss, accuracy) scalars.
    """
    bsz, t, d = embeddings_a.shape
    if loss_type == "batch_negative":
        a = embeddings_a.reshape(1, bsz * t, d)
        b = embeddings_b.reshape(1, bsz * t, d)
        loss_g, acc_g = _mnrl_grouped(a, b, scale, block_rows, block_cols,
                                      matmul_dtype)
        return loss_g[0], acc_g[0]
    # per_sequence: batch axis is the leading ("parallel") grid dimension.
    loss_g, acc_g = _mnrl_grouped(embeddings_a, embeddings_b, scale,
                                  block_rows, block_cols, matmul_dtype)
    return jnp.mean(loss_g), jnp.mean(acc_g)


def _reference(embeddings_a, embeddings_b, loss_type, scale=20.0):
    """Pure-JAX reference for correctness checking."""
    def pair(a, b):
        a_n = a / jnp.maximum(jnp.linalg.norm(a, axis=1, keepdims=True), _EPS)
        b_n = b / jnp.maximum(jnp.linalg.norm(b, axis=1, keepdims=True), _EPS)
        scores = (a_n @ b_n.T) * scale
        labels = jnp.arange(scores.shape[0])
        lse = jax.scipy.special.logsumexp(scores, axis=1)
        loss = jnp.mean(lse - scores[labels, labels])
        acc = jnp.mean((jnp.argmax(scores, axis=1) == labels).astype(jnp.float32))
        return loss, acc

    if loss_type == "batch_negative":
        d = embeddings_a.shape[-1]
        return pair(embeddings_a.reshape(-1, d), embeddings_b.reshape(-1, d))
    losses, accs = zip(*(pair(embeddings_a[i], embeddings_b[i])
                         for i in range(embeddings_a.shape[0])))
    return jnp.mean(jnp.stack(losses)), jnp.mean(jnp.stack(accs))


if __name__ == "__main__":
    # The GPT `model` attribute is unused in forward; only scale=20.0 matters.

    # --- tiny case: bsz=2, T=8, d=32 --------------------------------------
    bsz, T, d = 2, 8, 32
    ka, kb = jax.random.split(jax.random.PRNGKey(0))
    emb_a = jax.random.normal(ka, (bsz, T, d), dtype=jnp.float32)
    emb_b = jax.random.normal(kb, (bsz, T, d), dtype=jnp.float32)

    loss_bn, acc_bn = multiple_negatives_ranking_loss(
        emb_a, emb_b, "batch_negative")                       # grid (1, 1, 1)
    loss_bn2, acc_bn2 = multiple_negatives_ranking_loss(
        emb_a, emb_b, "batch_negative", block_rows=8)         # grid (1, 2, 1)
    loss_ps, acc_ps = multiple_negatives_ranking_loss(
        emb_a, emb_b, "per_sequence")                         # grid (2, 1, 1)

    # --- medium case: padding + multiple row AND column tiles -------------
    bsz2, T2, d2 = 2, 200, 64
    kc, kd = jax.random.split(jax.random.PRNGKey(1))
    emb_a2 = jax.random.normal(kc, (bsz2, T2, d2), dtype=jnp.float32)
    emb_b2 = jax.random.normal(kd, (bsz2, T2, d2), dtype=jnp.float32)
    loss_bn_m, acc_bn_m = multiple_negatives_ranking_loss(
        emb_a2, emb_b2, "batch_negative",
        block_rows=128, block_cols=128)   # N=400 -> pad 512, grid (1, 4, 4)
    loss_ps_m, acc_ps_m = multiple_negatives_ranking_loss(
        emb_a2, emb_b2, "per_sequence",
        block_rows=128, block_cols=128)   # N=200 -> pad 256, grid (2, 2, 2)

    # --- bf16 inputs: bf16 MXU operands, f32 softmax/LSE math --------------
    loss_b16, acc_b16 = multiple_negatives_ranking_loss(
        emb_a.astype(jnp.bfloat16), emb_b.astype(jnp.bfloat16),
        "batch_negative")

    jax.block_until_ready((loss_bn, acc_bn, loss_bn2, acc_bn2, loss_ps, acc_ps,
                           loss_bn_m, acc_bn_m, loss_ps_m, acc_ps_m,
                           loss_b16, acc_b16))

    ref_loss_bn, ref_acc_bn = _reference(emb_a, emb_b, "batch_negative")
    ref_loss_ps, ref_acc_ps = _reference(emb_a, emb_b, "per_sequence")
    ref_loss_bn_m, ref_acc_bn_m = _reference(emb_a2, emb_b2, "batch_negative")
    ref_loss_ps_m, ref_acc_ps_m = _reference(emb_a2, emb_b2, "per_sequence")

    assert jnp.allclose(loss_bn, ref_loss_bn, atol=5e-4, rtol=5e-4)
    assert jnp.allclose(acc_bn, ref_acc_bn, atol=1e-6)
    assert jnp.allclose(loss_bn2, ref_loss_bn, atol=5e-4, rtol=5e-4)
    assert jnp.allclose(acc_bn2, ref_acc_bn, atol=1e-6)
    assert jnp.allclose(loss_ps, ref_loss_ps, atol=5e-4, rtol=5e-4)
    assert jnp.allclose(acc_ps, ref_acc_ps, atol=1e-6)

    assert jnp.allclose(loss_bn_m, ref_loss_bn_m, atol=2e-3, rtol=2e-3)
    assert jnp.allclose(acc_bn_m, ref_acc_bn_m, atol=1e-2)   # near-tie argmax slack
    assert jnp.allclose(loss_ps_m, ref_loss_ps_m, atol=2e-3, rtol=2e-3)
    assert jnp.allclose(acc_ps_m, ref_acc_ps_m, atol=1e-2)

    # bf16 operand rounding at scale=20 -> loose loss check, skip accuracy.
    assert jnp.allclose(loss_b16, ref_loss_bn, atol=1e-1, rtol=5e-2)

    print("KERNEL_OK")
</pallas_src>

<mosaic_0001>
module attributes {stable_mosaic.version = 11 : i64} {
  func.func @_l2norm_t_kernel(%arg0: i32, %arg1: i32, %arg2: memref<1x16x32xf32, #tpu.memory_space<vmem>>, %arg3: memref<1x32x16xf32, #tpu.memory_space<vmem>>) attributes {dimension_semantics = [#tpu.dimension_semantics<parallel>, #tpu.dimension_semantics<parallel>], iteration_bounds = array<i64: 1, 1>, scalar_prefetch = 0 : i64, scratch_operands = 0 : i64, tpu.core_type = #tpu.core_type<tc>, window_params = [{transform_indices = @transform_0, window_bounds = array<i64: 1, 16, 32>}, {transform_indices = @transform_1, window_bounds = array<i64: 1, 32, 16>}]} {
    %c0 = arith.constant 0 : index
    %c0_0 = arith.constant 0 : index
    %c0_1 = arith.constant 0 : index
    %0 = vector.load %arg2[%c0, %c0_0, %c0_1] : memref<1x16x32xf32, #tpu.memory_space<vmem>>, vector<1x16x32xf32>
    %1 = vector.shape_cast %0 : vector<1x16x32xf32> to vector<16x32xf32>
    %2 = arith.mulf %1, %1 : vector<16x32xf32>
    %cst = arith.constant dense<0.000000e+00> : vector<16xf32>
    %3 = vector.multi_reduction <add>, %2, %cst [1] : vector<16x32xf32> to vector<16xf32>
    %4 = vector.shape_cast %3 : vector<16xf32> to vector<16x1xf32>
    %5 = math.sqrt %4 : vector<16x1xf32>
    %cst_2 = arith.constant 9.99999996E-13 : f32
    %6 = vector.broadcast %cst_2 : f32 to vector<16x1xf32>
    %7 = arith.maximumf %5, %6 : vector<16x1xf32>
    %cst_3 = arith.constant 1.000000e+00 : f32
    %8 = vector.broadcast %cst_3 : f32 to vector<16x1xf32>
    %9 = arith.divf %8, %7 : vector<16x1xf32>
    %10 = vector.broadcast %9 : vector<16x1xf32> to vector<16x32xf32>
    %11 = arith.mulf %1, %10 : vector<16x32xf32>
    %12 = tpu.transpose %11, [1, 0] : vector<16x32xf32> -> vector<32x16xf32>
    %c0_4 = arith.constant 0 : index
    %c0_5 = arith.constant 0 : index
    %c0_6 = arith.constant 0 : index
    %13 = vector.load %arg3[%c0_4, %c0_5, %c0_6] : memref<1x32x16xf32, #tpu.memory_space<vmem>>, vector<1x32x16xf32>
    %14 = vector.shape_cast %13 : vector<1x32x16xf32> to vector<32x16xf32>
    %15 = vector.shape_cast %12 : vector<32x16xf32> to vector<1x32x16xf32>
    tpu.vector_store %arg3[%c0_4, %c0_5, %c0_6], %15 {strides = array<i32>} : memref<1x32x16xf32, #tpu.memory_space<vmem>>, vector<1x32x16xf32>,
    return
  }
  func.func @transform_0(%arg0: i32, %arg1: i32) -> (i32, i32, i32) {
    %c0_i32 = arith.constant 0 : i32
    %c0_i32_0 = arith.constant 0 : i32
    return %arg0, %arg1, %c0_i32 : i32, i32, i32
  }
  func.func @transform_1(%arg0: i32, %arg1: i32) -> (i32, i32, i32) {
    %c0_i32 = arith.constant 0 : i32
    %c0_i32_0 = arith.constant 0 : i32
    return %arg0, %c0_i32, %arg1 : i32, i32, i32
  }
}

module attributes {stable_mosaic.version = 11 : i64} {
  func.func @_mnrl_kernel(%arg0: i32, %arg1: i32, %arg2: i32, %arg3: memref<1x16x32xf32, #tpu.memory_space<vmem>>, %arg4: memref<1x32x16xf32, #tpu.memory_space<vmem>>, %arg5: memref<1x16x1xf32, #tpu.memory_space<vmem>>, %arg6: memref<1x16x1xf32, #tpu.memory_space<vmem>>, %arg7: memref<16x32xf32, #tpu.memory_space<vmem>>, %arg8: memref<16x1xf32, #tpu.memory_space<vmem>>, %arg9: memref<16x1xf32, #tpu.memory_space<vmem>>, %arg10: memref<16x1xf32, #tpu.memory_space<vmem>>, %arg11: memref<16x1xi32, #tpu.memory_space<vmem>>) attributes {dimension_semantics = [#tpu.dimension_semantics<parallel>, #tpu.dimension_semantics<parallel>, #tpu.dimension_semantics<arbitrary>], iteration_bounds = array<i64: 1, 1, 1>, scalar_prefetch = 0 : i64, scratch_operands = 5 : i64, tpu.core_type = #tpu.core_type<tc>, window_params = [{transform_indices = @transform_0, window_bounds = array<i64: 1, 16, 32>}, {transform_indices = @transform_1, window_bounds = array<i64: 1, 32, 16>}, {transform_indices = @transform_2, window_bounds = array<i64: 1, 16, 1>}, {transform_indices = @transform_3, window_bounds = array<i64: 1, 16, 1>}]} {
    %c16_i32 = arith.constant 16 : i32
    %0 = arith.muli %arg2, %c16_i32 : i32
    %c0_i32 = arith.constant 0 : i32
    %1 = arith.cmpi eq, %arg2, %c0_i32 : i32
    %2 = arith.extui %1 : i1 to i32
    %c0_i32_0 = arith.constant 0 : i32
    %3 = arith.cmpi ne, %2, %c0_i32_0 : i32
    scf.if %3 {
      %c0_27 = arith.constant 0 : index
      %c0_28 = arith.constant 0 : index
      %c0_29 = arith.constant 0 : index
      %49 = vector.load %arg3[%c0_27, %c0_28, %c0_29] : memref<1x16x32xf32, #tpu.memory_space<vmem>>, vector<1x16x32xf32>
      %50 = vector.shape_cast %49 : vector<1x16x32xf32> to vector<16x32xf32>
      %51 = arith.mulf %50, %50 : vector<16x32xf32>
      %cst_30 = arith.constant dense<0.000000e+00> : vector<16xf32>
      %52 = vector.multi_reduction <add>, %51, %cst_30 [1] : vector<16x32xf32> to vector<16xf32>
      %53 = vector.shape_cast %52 : vector<16xf32> to vector<16x1xf32>
      %54 = math.sqrt %53 : vector<16x1xf32>
      %cst_31 = arith.constant 9.99999996E-13 : f32
      %55 = vector.broadcast %cst_31 : f32 to vector<16x1xf32>
      %56 = arith.maximumf %54, %55 : vector<16x1xf32>
      %cst_32 = arith.constant 2.000000e+01 : f32
      %57 = vector.broadcast %cst_32 : f32 to vector<16x1xf32>
      %58 = arith.divf %57, %56 : vector<16x1xf32>
      %59 = vector.broadcast %58 : vector<16x1xf32> to vector<16x32xf32>
      %60 = arith.mulf %50, %59 : vector<16x32xf32>
      %c0_33 = arith.constant 0 : index
      %c0_34 = arith.constant 0 : index
      %61 = vector.load %arg7[%c0_33, %c0_34] : memref<16x32xf32, #tpu.memory_space<vmem>>, vector<16x32xf32>
      tpu.vector_store %arg7[%c0_33, %c0_34], %60 {strides = array<i32>} : memref<16x32xf32, #tpu.memory_space<vmem>>, vector<16x32xf32>,
      %cst_35 = arith.constant -1.000000e+30 : f32
      %62 = vector.broadcast %cst_35 : f32 to vector<16x1xf32>
      %c0_36 = arith.constant 0 : index
      %c0_37 = arith.constant 0 : index
      %63 = vector.load %arg8[%c0_36, %c0_37] : memref<16x1xf32, #tpu.memory_space<vmem>>, vector<16x1xf32>
      tpu.vector_store %arg8[%c0_36, %c0_37], %62 {strides = array<i32>} : memref<16x1xf32, #tpu.memory_space<vmem>>, vector<16x1xf32>,
      %cst_38 = arith.constant 0.000000e+00 : f32
      %64 = vector.broadcast %cst_38 : f32 to vector<16x1xf32>
      %c0_39 = arith.constant 0 : index
      %c0_40 = arith.constant 0 : index
      %65 = vector.load %arg9[%c0_39, %c0_40] : memref<16x1xf32, #tpu.memory_space<vmem>>, vector<16x1xf32>
      tpu.vector_store %arg9[%c0_39, %c0_40], %64 {strides = array<i32>} : memref<16x1xf32, #tpu.memory_space<vmem>>, vector<16x1xf32>,
      %cst_41 = arith.constant 0.000000e+00 : f32
      %66 = vector.broadcast %cst_41 : f32 to vector<16x1xf32>
      %c0_42 = arith.constant 0 : index
      %c0_43 = arith.constant 0 : index
      %67 = vector.load %arg10[%c0_42, %c0_43] : memref<16x1xf32, #tpu.memory_space<vmem>>, vector<16x1xf32>
      tpu.vector_store %arg10[%c0_42, %c0_43], %66 {strides = array<i32>} : memref<16x1xf32, #tpu.memory_space<vmem>>, vector<16x1xf32>,
      %c16_i32_44 = arith.constant 16 : i32
      %68 = vector.broadcast %c16_i32_44 : i32 to vector<16x1xi32>
      %c0_45 = arith.constant 0 : index
      %c0_46 = arith.constant 0 : index
      %69 = vector.load %arg11[%c0_45, %c0_46] : memref<16x1xi32, #tpu.memory_space<vmem>>, vector<16x1xi32>
      tpu.vector_store %arg11[%c0_45, %c0_46], %68 {strides = array<i32>} : memref<16x1xi32, #tpu.memory_space<vmem>>, vector<16x1xi32>,
    } else {
    }
    %c0 = arith.constant 0 : index
    %c0_1 = arith.constant 0 : index
    %4 = vector.load %arg7[%c0, %c0_1] : memref<16x32xf32, #tpu.memory_space<vmem>>, vector<16x32xf32>
    %c0_2 = arith.constant 0 : index
    %c0_3 = arith.constant 0 : index
    %c0_4 = arith.constant 0 : index
    %5 = vector.load %arg4[%c0_2, %c0_3, %c0_4] : memref<1x32x16xf32, #tpu.memory_space<vmem>>, vector<1x32x16xf32>
    %6 = vector.shape_cast %5 : vector<1x32x16xf32> to vector<32x16xf32>
    %cst = arith.constant dense<0.000000e+00> : vector<16x16xf32>
    %7 = tpu.matmul %4, %6, %cst {dimension_numbers = #tpu.dot_dimension_numbers<[1], [0], [0], [1], [0, 0, 1, 1], [], []>} : vector<16x32xf32>, vector<32x16xf32>, vector<16x16xf32> -> vector<16x16xf32>
    %8 = tpu.iota {dimensions = array<i32: 1>} : vector<16x16xi32>
    %9 = vector.broadcast %0 : i32 to vector<16x16xi32>
    %10 = arith.addi %8, %9 : vector<16x16xi32>
    %c1_i32 = arith.constant 1 : i32
    %11 = arith.addi %arg1, %c1_i32 : i32
    %c16_i32_5 = arith.constant 16 : i32
    %12 = arith.muli %11, %c16_i32_5 : i32
    %13 = arith.cmpi slt, %0, %12 : i32
    %c16_i32_6 = arith.constant 16 : i32
    %14 = arith.addi %0, %c16_i32_6 : i32
    %c16_i32_7 = arith.constant 16 : i32
    %15 = arith.muli %arg1, %c16_i32_7 : i32
    %16 = arith.cmpi sgt, %14, %15 : i32
    %17 = arith.andi %13, %16 : i1
    %18 = arith.extui %17 : i1 to i32
    %c0_i32_8 = arith.constant 0 : i32
    %19 = arith.cmpi ne, %18, %c0_i32_8 : i32
    scf.if %19 {
      %49 = tpu.iota {dimensions = array<i32: 0>} : vector<16x16xi32>
      %c16_i32_27 = arith.constant 16 : i32
      %50 = arith.muli %arg1, %c16_i32_27 : i32
      %51 = vector.broadcast %50 : i32 to vector<16x16xi32>
      %52 = arith.addi %49, %51 : vector<16x16xi32>
      %c0_28 = arith.constant 0 : index
      %c0_29 = arith.constant 0 : index
      %53 = vector.load %arg10[%c0_28, %c0_29] : memref<16x1xf32, #tpu.memory_space<vmem>>, vector<16x1xf32>
      %54 = arith.cmpi eq, %10, %52 : vector<16x16xi32>
      %cst_30 = arith.constant 0.000000e+00 : f32
      %55 = vector.broadcast %cst_30 : f32 to vector<16x16xf32>
      %56 = arith.select %54, %7, %55 : vector<16x16xi1>, vector<16x16xf32>
      %cst_31 = arith.constant dense<0.000000e+00> : vector<16xf32>
      %57 = vector.multi_reduction <add>, %56, %cst_31 [1] : vector<16x16xf32> to vector<16xf32>
      %58 = vector.shape_cast %57 : vector<16xf32> to vector<16x1xf32>
      %59 = arith.addf %53, %58 : vector<16x1xf32>
      %c0_32 = arith.constant 0 : index
      %c0_33 = arith.constant 0 : index
      %60 = vector.load %arg10[%c0_32, %c0_33] : memref<16x1xf32, #tpu.memory_space<vmem>>, vector<16x1xf32>
      tpu.vector_store %arg10[%c0_32, %c0_33], %59 {strides = array<i32>} : memref<16x1xf32, #tpu.memory_space<vmem>>, vector<16x1xf32>,
    } else {
    }
    %cst_9 = arith.constant dense<0xFF800000> : vector<16xf32>
    %20 = vector.multi_reduction <maximumf>, %7, %cst_9 [1] : vector<16x16xf32> to vector<16xf32>
    %21 = vector.shape_cast %20 : vector<16xf32> to vector<16x1xf32>
    %22 = vector.broadcast %21 : vector<16x1xf32> to vector<16x16xf32>
    %23 = arith.cmpf oeq, %7, %22 : vector<16x16xf32>
    %c16_i32_10 = arith.constant 16 : i32
    %24 = vector.broadcast %c16_i32_10 : i32 to vector<16x16xi32>
    %25 = arith.select %23, %10, %24 : vector<16x16xi1>, vector<16x16xi32>
    %cst_11 = arith.constant dense<2147483647> : vector<16xi32>
    %26 = vector.multi_reduction <minsi>, %25, %cst_11 [1] : vector<16x16xi32> to vector<16xi32>
    %27 = vector.shape_cast %26 : vector<16xi32> to vector<16x1xi32>
    %c0_12 = arith.constant 0 : index
    %c0_13 = arith.constant 0 : index
    %28 = vector.load %arg8[%c0_12, %c0_13] : memref<16x1xf32, #tpu.memory_space<vmem>>, vector<16x1xf32>
    %29 = arith.maximumf %28, %21 : vector<16x1xf32>
    %c0_14 = arith.constant 0 : index
    %c0_15 = arith.constant 0 : index
    %30 = vector.load %arg9[%c0_14, %c0_15] : memref<16x1xf32, #tpu.memory_space<vmem>>, vector<16x1xf32>
    %31 = arith.subf %28, %29 : vector<16x1xf32>
    %32 = math.exp %31 : vector<16x1xf32>
    %33 = arith.mulf %30, %32 : vector<16x1xf32>
    %34 = vector.broadcast %29 : vector<16x1xf32> to vector<16x16xf32>
    %35 = arith.subf %7, %34 : vector<16x16xf32>
    %36 = math.exp %35 : vector<16x16xf32>
    %cst_16 = arith.constant dense<0.000000e+00> : vector<16xf32>
    %37 = vector.multi_reduction <add>, %36, %cst_16 [1] : vector<16x16xf32> to vector<16xf32>
    %38 = vector.shape_cast %37 : vector<16xf32> to vector<16x1xf32>
    %39 = arith.addf %33, %38 : vector<16x1xf32>
    %c0_17 = arith.constant 0 : index
    %c0_18 = arith.constant 0 : index
    %40 = vector.load %arg9[%c0_17, %c0_18] : memref<16x1xf32, #tpu.memory_space<vmem>>, vector<16x1xf32>
    tpu.vector_store %arg9[%c0_17, %c0_18], %39 {strides = array<i32>} : memref<16x1xf32, #tpu.memory_space<vmem>>, vector<16x1xf32>,
    %41 = arith.cmpf ogt, %21, %28 : vector<16x1xf32>
    %c0_19 = arith.constant 0 : index
    %c0_20 = arith.constant 0 : index
    %42 = vector.load %arg11[%c0_19, %c0_20] : memref<16x1xi32, #tpu.memory_space<vmem>>, vector<16x1xi32>
    %43 = arith.select %41, %27, %42 : vector<16x1xi1>, vector<16x1xi32>
    %c0_21 = arith.constant 0 : index
    %c0_22 = arith.constant 0 : index
    %44 = vector.load %arg11[%c0_21, %c0_22] : memref<16x1xi32, #tpu.memory_space<vmem>>, vector<16x1xi32>
    tpu.vector_store %arg11[%c0_21, %c0_22], %43 {strides = array<i32>} : memref<16x1xi32, #tpu.memory_space<vmem>>, vector<16x1xi32>,
    %c0_23 = arith.constant 0 : index
    %c0_24 = arith.constant 0 : index
    %45 = vector.load %arg8[%c0_23, %c0_24] : memref<16x1xf32, #tpu.memory_space<vmem>>, vector<16x1xf32>
    tpu.vector_store %arg8[%c0_23, %c0_24], %29 {strides = array<i32>} : memref<16x1xf32, #tpu.memory_space<vmem>>, vector<16x1xf32>,
    %c0_i32_25 = arith.constant 0 : i32
    %46 = arith.cmpi eq, %arg2, %c0_i32_25 : i32
    %47 = arith.extui %46 : i1 to i32
    %c0_i32_26 = arith.constant 0 : i32
    %48 = arith.cmpi ne, %47, %c0_i32_26 : i32
    scf.if %48 {
      %c0_27 = arith.constant 0 : index
      %c0_28 = arith.constant 0 : index
      %49 = vector.load %arg8[%c0_27, %c0_28] : memref<16x1xf32, #tpu.memory_space<vmem>>, vector<16x1xf32>
      %c0_29 = arith.constant 0 : index
      %c0_30 = arith.constant 0 : index
      %50 = vector.load %arg9[%c0_29, %c0_30] : memref<16x1xf32, #tpu.memory_space<vmem>>, vector<16x1xf32>
      %51 = math.log %50 : vector<16x1xf32>
      %52 = arith.addf %49, %51 : vector<16x1xf32>
      %53 = tpu.iota {dimensions = array<i32: 0>} : vector<16x1xi32>
      %c16_i32_31 = arith.constant 16 : i32
      %54 = arith.muli %arg1, %c16_i32_31 : i32
      %55 = vector.broadcast %54 : i32 to vector<16x1xi32>
      %56 = arith.addi %53, %55 : vector<16x1xi32>
      %c0_32 = arith.constant 0 : index
      %c0_33 = arith.constant 0 : index
      %57 = vector.load %arg10[%c0_32, %c0_33] : memref<16x1xf32, #tpu.memory_space<vmem>>, vector<16x1xf32>
      %58 = arith.subf %52, %57 : vector<16x1xf32>
      %c0_34 = arith.constant 0 : index
      %c0_35 = arith.constant 0 : index
      %c0_36 = arith.constant 0 : index
      %59 = vector.load %arg5[%c0_34, %c0_35, %c0_36] : memref<1x16x1xf32, #tpu.memory_space<vmem>>, vector<1x16x1xf32>
      %60 = vector.shape_cast %59 : vector<1x16x1xf32> to vector<16x1xf32>
      %61 = vector.shape_cast %58 : vector<16x1xf32> to vector<1x16x1xf32>
      tpu.vector_store %arg5[%c0_34, %c0_35, %c0_36], %61 {strides = array<i32>} : memref<1x16x1xf32, #tpu.memory_space<vmem>>, vector<1x16x1xf32>,
      %c0_37 = arith.constant 0 : index
      %c0_38 = arith.constant 0 : index
      %62 = vector.load %arg11[%c0_37, %c0_38] : memref<16x1xi32, #tpu.memory_space<vmem>>, vector<16x1xi32>
      %63 = arith.cmpi eq, %62, %56 : vector<16x1xi32>
      %64 = arith.extui %63 : vector<16x1xi1> to vector<16x1xi32>
      %65 = arith.sitofp %64 : vector<16x1xi32> to vector<16x1xf32>
      %c0_39 = arith.constant 0 : index
      %c0_40 = arith.constant 0 : index
      %c0_41 = arith.constant 0 : index
      %66 = vector.load %arg6[%c0_39, %c0_40, %c0_41] : memref<1x16x1xf32, #tpu.memory_space<vmem>>, vector<1x16x1xf32>
      %67 = vector.shape_cast %66 : vector<1x16x1xf32> to vector<16x1xf32>
      %68 = vector.shape_cast %65 : vector<16x1xf32> to vector<1x16x1xf32>
      tpu.vector_store %arg6[%c0_39, %c0_40, %c0_41], %68 {strides = array<i32>} : memref<1x16x1xf32, #tpu.memory_space<vmem>>, vector<1x16x1xf32>,
    } else {
    }
    return
  }
  func.func @transform_0(%arg0: i32, %arg1: i32, %arg2: i32) -> (i32, i32, i32) {
    %c0_i32 = arith.constant 0 : i32
    %c0_i32_0 = arith.constant 0 : i32
    return %arg0, %arg1, %c0_i32 : i32, i32, i32
  }
  func.func @transform_1(%arg0: i32, %arg1: i32, %arg2: i32) -> (i32, i32, i32) {
    %c0_i32 = arith.constant 0 : i32
    %c0_i32_0 = arith.constant 0 : i32
    return %arg0, %c0_i32, %arg2 : i32, i32, i32
  }
  func.func @transform_2(%arg0: i32, %arg1: i32, %arg2: i32) -> (i32, i32, i32) {
    %c0_i32 = arith.constant 0 : i32
    %c0_i32_0 = arith.constant 0 : i32
    return %arg0, %arg1, %c0_i32 : i32, i32, i32
  }
  func.func @transform_3(%arg0: i32, %arg1: i32, %arg2: i32) -> (i32, i32, i32) {
    %c0_i32 = arith.constant 0 : i32
    %c0_i32_0 = arith.constant 0 : i32
    return %arg0, %arg1, %c0_i32 : i32, i32, i32
  }
}

</mosaic_0001>

<llo_original>
// kernel: multiple_negatives_ranking_loss.2
$region0: #{multiple_negatives_ranking_loss.2}
  #allocation0 [shape = 'u32[]', space=smem, size = 0x4, offset = 0x4, fixed_abs, tag = 'smem constant byte address 0x4 - core index']
  #allocation1 [shape = 'u32[144,128]{1,0:T(1,128)}', space=vmem, size = 0x12000, scoped, tag = 'internal scratch']
  %s0 = inlined_call_operand.hbm [shape: f32[1,16,32], index: 0, kind: input, shape index: {}]
  %s1 = inlined_call_operand.vmem [shape: f32[1,32,16], index: 1, kind: output, shape index: {}]
  %s2 = sld [smem:[#allocation0]]
  $region18: #{multiple_negatives_ranking_loss.2} parent=0
    _
  %s4 = ssub.s32 1, %s2
  %s5 = scalar_select 0, %s4, %s2
  $region1: #{multiple_negatives_ranking_loss.2} parent=0
    #allocation2 [shape = 'u8[8192]{0}', space=vmem, size = 0x2000, scoped, tag = 'input window, operand 0, single buffered']
    #allocation3 [shape = 's32[1]{0}', space=sflag, size = 0x4, scoped, tag = 'scoped memory for multiple_negatives_ranking_loss.2']
    %6 = vsyncpa [#allocation3], 0
    // Predicated region
    $region2: #{multiple_negatives_ranking_loss.2} parent=1 // pred_check
      _
    $region3: #{multiple_negatives_ranking_loss.2} parent=1 // pred_check_branch
      %8 = sbr.rel (0) target = $region5
    $region4: #{multiple_negatives_ranking_loss.2} parent=1 // pred_region
      %s10 = ssub.s32 256, 256
      %11 = vsyncadd [#allocation3], %s10
      %s12 = sshll.u32 [#allocation2], 4
      %s13 = int_to_ptr.vmem [resolvable:$true] %s12
      %18 = dma.hbm_to_vmem [thread:$0]  %s0, 256, %s13, [#allocation3], 128, 128, 8
    $region5: #{multiple_negatives_ranking_loss.2} parent=1 // pred_fallthru
      _
    // Predicated region
    $region6: #{multiple_negatives_ranking_loss.2} parent=1 // pred_check
      _
    $region7: #{multiple_negatives_ranking_loss.2} parent=1 // pred_check_branch
      %20 = sbr.rel (0) target = $region9
    $region8: #{multiple_negatives_ranking_loss.2} parent=1 // pred_region
      %21 = dma.done [#allocation3], 256
    $region9: #{multiple_negatives_ranking_loss.2} parent=1 // pred_fallthru
      _
    %v22 = vld [vmem:[#allocation2] sm:$0xff]
    %v23 = vld [vmem:[#allocation2 + $0x8] sm:$0xff]
    %v24 = vmul.f32 %v22, %v22
    %v25 = vmul.f32 %v23, %v23
    %vm26 = vcmask 261120
    %v27 = vsel %vm26, %v24, 0.0
    %28 = vadd.xlane.f32.xlu0 %v27
    %v29 = vpop.xlane.xlu0 %28
    %v30 = vsel %vm26, %v25, 0.0
    %31 = vadd.xlane.f32.xlu0 %v30
    %v32 = vpop.xlane.xlu0 %31
    %v33 = vrsqrt.pop %v29
    %v34 = vmul.f32 %v29, %v33
    %vm35 = vcmp.eq.f32.partialorder %v29, inf
    %v36 = vsel %vm35, %v29, %v34
    %vm37 = vcmp.eq.f32.partialorder %v29, 0.0
    %v38 = vand.u32 %v29, 2147483648
    %v39 = vsel %vm37, %v38, %v36
    %v40 = vrsqrt.pop %v32
    %v41 = vmul.f32 %v32, %v40
    %vm42 = vcmp.eq.f32.partialorder %v32, inf
    %v43 = vsel %vm42, %v32, %v41
    %vm44 = vcmp.eq.f32.partialorder %v32, 0.0
    %v45 = vand.u32 %v32, 2147483648
    %v46 = vsel %vm44, %v45, %v43
    %v47 = vmax.f32 %v39, 1e-12
    %v48 = vmax.f32 %v46, 1e-12
    %v49 = vrcp.pop %v47
    %v50 = vmul.f32 1.0, %v49
    %v51 = vrcp.pop %v48
    %v52 = vmul.f32 1.0, %v51
    %v53 = vmul.f32 %v22, %v50
    %v54 = vmul.f32 %v23, %v52
    %55 = vxpose.xlu0.b32.start [1/16] %v53, 128
    %56 = vxpose.xlu0.b32.cont [2/16] %v54, 128
    %57 = vxpose.xlu0.b32.cont [3/16] 0.0, 128
    %58 = vxpose.xlu0.b32.cont [4/16] 0.0, 128
    %59 = vxpose.xlu0.b32.cont [5/16] 0.0, 128
    %60 = vxpose.xlu0.b32.cont [6/16] 0.0, 128
    %61 = vxpose.xlu0.b32.cont [7/16] 0.0, 128
    %62 = vxpose.xlu0.b32.cont [8/16] 0.0, 128
    %63 = vxpose.xlu0.b32.cont [9/16] 0.0, 128
    %64 = vxpose.xlu0.b32.cont [10/16] 0.0, 128
    %65 = vxpose.xlu0.b32.cont [11/16] 0.0, 128
    %66 = vxpose.xlu0.b32.cont [12/16] 0.0, 128
    %67 = vxpose.xlu0.b32.cont [13/16] 0.0, 128
    %68 = vxpose.xlu0.b32.cont [14/16] 0.0, 128
    %69 = vxpose.xlu0.b32.cont [15/16] 0.0, 128
    %70 = vxpose.xlu0.b32.end [16/16] 0.0, 128
    %v71 = vpop.trf.xlu0
    %v72 = vpop.trf.xlu0
    %v73 = vpop.trf.xlu0
    %v74 = vpop.trf.xlu0
    %v75 = vpop.trf.xlu0
    %v76 = vpop.trf.xlu0
    %v77 = vpop.trf.xlu0
    %v78 = vpop.trf.xlu0
    %v79 = vpop.trf.xlu0
    %v80 = vpop.trf.xlu0
    %v81 = vpop.trf.xlu0
    %v82 = vpop.trf.xlu0
    %v83 = vpop.trf.xlu0
    %v84 = vpop.trf.xlu0
    %v85 = vpop.trf.xlu0
    %v86 = vpop.trf.xlu0
    %vm87 = vcmask 130048
    %88 = vst.msk [vmem:[%s1] sm:$0xff] %vm87, %v71
    %89 = vst.msk [vmem:[%s1 + $0x8] sm:$0xff] %vm87, %v72
    %90 = vst.msk [vmem:[%s1 + $0x10] sm:$0xff] %vm87, %v73
    %91 = vst.msk [vmem:[%s1 + $0x18] sm:$0xff] %vm87, %v74
    // Predicated region
    $region10: #{multiple_negatives_ranking_loss.2} parent=1 // pred_check
      _
    $region11: #{multiple_negatives_ranking_loss.2} parent=1 // pred_check_branch
      %93 = sbr.rel (0) target = $region13
    $region12: #{multiple_negatives_ranking_loss.2} parent=1 // pred_region
      _
    $region13: #{multiple_negatives_ranking_loss.2} parent=1 // pred_fallthru
      _
    // Predicated region
    $region14: #{multiple_negatives_ranking_loss.2} parent=1 // pred_check
      _
    $region15: #{multiple_negatives_ranking_loss.2} parent=1 // pred_check_branch
      %95 = sbr.rel (0) target = $region17
    $region16: #{multiple_negatives_ranking_loss.2} parent=1 // pred_region
      _
    $region17: #{multiple_negatives_ranking_loss.2} parent=1 // pred_fallthru
      _
    %96 = vsyncpa [#allocation3], 1

// kernel: multiple_negatives_ranking_loss.3
$region0: #{multiple_negatives_ranking_loss.3}
  #allocation0 [shape = 'u32[]', space=smem, size = 0x4, offset = 0x4, fixed_abs, tag = 'smem constant byte address 0x4 - core index']
  #allocation1 [shape = 'u32[144,128]{1,0:T(1,128)}', space=vmem, size = 0x12000, scoped, tag = 'internal scratch']
  #allocation2 [shape = 'f32[16,32]{1,0:T(8,128)}', space=vmem, size = 0x2000, scoped, tag = 'scratch operand']
  #allocation3 [shape = 'f32[16,1]{1,0:T(8,128)}', space=vmem, size = 0x2000, scoped, tag = 'scratch operand']
  #allocation4 [shape = 'f32[16,1]{1,0:T(8,128)}', space=vmem, size = 0x2000, scoped, tag = 'scratch operand']
  #allocation5 [shape = 'f32[16,1]{1,0:T(8,128)}', space=vmem, size = 0x2000, scoped, tag = 'scratch operand']
  #allocation6 [shape = 's32[16,1]{1,0:T(8,128)}', space=vmem, size = 0x2000, scoped, tag = 'scratch operand']
  %s0 = inlined_call_operand.vmem [shape: f32[1,16,32], index: 0, kind: input, shape index: {}]
  %s1 = inlined_call_operand.vmem [shape: f32[1,32,16], index: 1, kind: input, shape index: {}]
  %s2 = inlined_call_operand.vmem [shape: f32[1,16,1], index: 2, kind: output, shape index: {0}]
  %s3 = inlined_call_operand.vmem [shape: f32[1,16,1], index: 3, kind: output, shape index: {1}]
  %4 = xla_tuple %s2, %s3
  %s5 = sld [smem:[#allocation0]]
  $region38: #{multiple_negatives_ranking_loss.3} parent=0
    _
  %s7 = ssub.s32 1, %s5
  %s8 = scalar_select 0, %s7, %s5
  // Predicated region
  $region2: #{multiple_negatives_ranking_loss.3} parent=0 // pred_check
    _
  $region3: #{multiple_negatives_ranking_loss.3} parent=0 // pred_check_branch
    %10 = sbr.rel (0) target = $region5
  $region4: #{multiple_negatives_ranking_loss.3} parent=0 // pred_region
    _
  $region5: #{multiple_negatives_ranking_loss.3} parent=0 // pred_fallthru
    _
  // Predicated region
  $region6: #{multiple_negatives_ranking_loss.3} parent=0 // pred_check
    _
  $region7: #{multiple_negatives_ranking_loss.3} parent=0 // pred_check_branch
    %12 = sbr.rel (0) target = $region9
  $region8: #{multiple_negatives_ranking_loss.3} parent=0 // pred_region
    _
  $region9: #{multiple_negatives_ranking_loss.3} parent=0 // pred_fallthru
    _
  %s13 = smul.u32 0, 16
  %p14 = scmp.eq.s32.totalorder 0, 0
  // Predicated region
  $region10: #{multiple_negatives_ranking_loss.3} parent=0 // pred_check
    %p15 = pneg %p14
  $region11: #{multiple_negatives_ranking_loss.3} parent=0 // pred_check_branch
    %17 = sbr.rel (%p15) target = $region13
  $region12: #{multiple_negatives_ranking_loss.3} parent=0 // pred_region
    %v18 = vld [vmem:[%s0] sm:$0xff]
    %v19 = vld [vmem:[%s0 + $0x8] sm:$0xff]
    %v20 = vmul.f32 %v18, %v18
    %v21 = vmul.f32 %v19, %v19
    %vm22 = vcmask 261120
    %v23 = vsel %vm22, %v20, 0.0
    %24 = vadd.xlane.f32.xlu0 %v23
    %v25 = vpop.xlane.xlu0 %24
    %v26 = vsel %vm22, %v21, 0.0
    %27 = vadd.xlane.f32.xlu0 %v26
    %v28 = vpop.xlane.xlu0 %27
    %v29 = vrsqrt.pop %v25
    %v30 = vmul.f32 %v25, %v29
    %vm31 = vcmp.eq.f32.partialorder %v25, inf
    %v32 = vsel %vm31, %v25, %v30
    %vm33 = vcmp.eq.f32.partialorder %v25, 0.0
    %v34 = vand.u32 %v25, 2147483648
    %v35 = vsel %vm33, %v34, %v32
    %v36 = vrsqrt.pop %v28
    %v37 = vmul.f32 %v28, %v36
    %vm38 = vcmp.eq.f32.partialorder %v28, inf
    %v39 = vsel %vm38, %v28, %v37
    %vm40 = vcmp.eq.f32.partialorder %v28, 0.0
    %v41 = vand.u32 %v28, 2147483648
    %v42 = vsel %vm40, %v41, %v39
    %v43 = vmax.f32 %v35, 1e-12
    %v44 = vmax.f32 %v42, 1e-12
    %v45 = vrcp.pop %v43
    %v46 = vmul.f32 20.0, %v45
    %v47 = vrcp.pop %v44
    %v48 = vmul.f32 20.0, %v47
    %v49 = vmul.f32 %v18, %v46
    %v50 = vmul.f32 %v19, %v48
    %51 = vst.msk [vmem:[#allocation2] sm:$0xff] %vm22, %v49
    %52 = vst.msk [vmem:[#allocation2 + $0x8] sm:$0xff] %vm22, %v50
    %vm53 = vcmask 7168
    %54 = vst.msk [vmem:[#allocation3] sm:$0xff] %vm53, -1e+30
    %55 = vst.msk [vmem:[#allocation3 + $0x8] sm:$0xff] %vm53, -1e+30
    %56 = vst.msk [vmem:[#allocation4] sm:$0xff] %vm53, 0.0
    %57 = vst.msk [vmem:[#allocation4 + $0x8] sm:$0xff] %vm53, 0.0
    %58 = vst.msk [vmem:[#allocation5] sm:$0xff] %vm53, 0.0
    %59 = vst.msk [vmem:[#allocation5 + $0x8] sm:$0xff] %vm53, 0.0
    %60 = vst.msk [vmem:[#allocation6] sm:$0xff] %vm53, 16
    %61 = vst.msk [vmem:[#allocation6 + $0x8] sm:$0xff] %vm53, 16
  $region13: #{multiple_negatives_ranking_loss.3} parent=0 // pred_fallthru
    _
  %v62 = vld [vmem:[#allocation2] sm:$0xff]
  %v63 = vld [vmem:[#allocation2 + $0x8] sm:$0xff]
  %v64 = vld [vmem:[%s1] sm:$0xff]
  %v65 = vld [vmem:[%s1 + $0x8] sm:$0xff]
  %v66 = vld [vmem:[%s1 + $0x10] sm:$0xff]
  %v67 = vld [vmem:[%s1 + $0x18] sm:$0xff]
  %vm68 = vcmask 261120
  %v70 = vsel %vm68, %v62, 0
  %v73 = vsel %vm68, %v63, 0
  %75 = vmatprep.subr.mxu0 0.0
  %76 = vmatpush1.msra.mxu0 %v64
  %77 = vmatprep.subr.mxu0 0.0
  %78 = vmatpush1.msra.mxu0 %v65
  %79 = vmatprep.subr.mxu0 0.0
  %80 = vmatpush1.msra.mxu0 %v66
  %81 = vmatprep.subr.mxu0 0.0
  %82 = vmatpush1.msra.mxu0 %v67
  %83 = vmatprep.subr.mxu0 0.0
  %84 = vmatpush1.msra.mxu0 0.0
  %85 = vmatprep.subr.mxu0 0.0
  %86 = vmatpush1.msra.mxu0 0.0
  %87 = vmatprep.subr.mxu0 0.0
  %88 = vmatpush1.msra.mxu0 0.0
  %89 = vmatprep.subr.mxu0 0.0
  %90 = vmatpush1.msra.mxu0 0.0
  %91 = vmatprep.subr.mxu0 0.0
  %92 = vmatpush1.msra.mxu0 0.0
  %93 = vmatprep.subr.mxu0 0.0
  %94 = vmatpush1.msra.mxu0 0.0
  %95 = vmatprep.subr.mxu0 0.0
  %96 = vmatpush1.msra.mxu0 0.0
  %97 = vmatprep.subr.mxu0 0.0
  %98 = vmatpush1.msra.mxu0 0.0
  %99 = vmatprep.subr.mxu0 0.0
  %100 = vmatpush1.msra.mxu0 0.0
  %101 = vmatprep.subr.mxu0 0.0
  %102 = vmatpush1.msra.mxu0 0.0
  %103 = vmatprep.subr.mxu0 0.0
  %104 = vmatpush1.msra.mxu0 0.0
  %105 = vmatprep.subr.mxu0 0.0
  %106 = vmatpush1.msra.mxu0 0.0
  %107 = vmatprep.subr.mxu0 0.0
  %108 = vmatpush1.msra.mxu0 0.0
  %109 = vmatprep.subr.mxu0 0.0
  %110 = vmatpush1.msra.mxu0 0.0
  %111 = vmatprep.subr.mxu0 0.0
  %112 = vmatpush1.msra.mxu0 0.0
  %113 = vmatprep.subr.mxu0 0.0
  %114 = vmatpush1.msra.mxu0 0.0
  %115 = vmatprep.subr.mxu0 0.0
  %116 = vmatpush1.msra.mxu0 0.0
  %117 = vmatprep.subr.mxu0 0.0
  %118 = vmatpush1.msra.mxu0 0.0
  %119 = vmatprep.subr.mxu0 0.0
  %120 = vmatpush1.msra.mxu0 0.0
  %121 = vmatprep.subr.mxu0 0.0
  %122 = vmatpush1.msra.mxu0 0.0
  %123 = vmatprep.subr.mxu0 0.0
  %124 = vmatpush1.msra.mxu0 0.0
  %125 = vmatprep.subr.mxu0 0.0
  %126 = vmatpush1.msra.mxu0 0.0
  %127 = vmatprep.subr.mxu0 0.0
  %128 = vmatpush1.msra.mxu0 0.0
  %129 = vmatprep.subr.mxu0 0.0
  %130 = vmatpush1.msra.mxu0 0.0
  %131 = vmatprep.subr.mxu0 0.0
  %132 = vmatpush1.msra.mxu0 0.0
  %133 = vmatprep.subr.mxu0 0.0
  %134 = vmatpush1.msra.mxu0 0.0
  %135 = vmatprep.subr.mxu0 0.0
  %136 = vmatpush1.msra.mxu0 0.0
  %137 = vmatprep.subr.mxu0 0.0
  %138 = vmatpush1.msra.mxu0 0.0
  %139 = vmatprep.mubr.f32.mxu0 0.0
  %140 = vmatmul.mubr.f32.gmra.mrb[0].mxu0 %v70
  %v141 = vpop.f32.mrb[0].mxu0
  %v142 = vadd.f32 0.0, %v141
  %v143 = vpop.f32.mrb[0].mxu0
  %144 = vmatprep.mubr.f32.mxu0 0.0
  %145 = vmatmul.mubr.f32.gmra.mrb[0].mxu0 %v73
  %v146 = vpop.f32.mrb[0].mxu0
  %v147 = vadd.f32 0.0, %v146
  %v148 = vpop.f32.mrb[0].mxu0
  %149 = vdwg.mxu0
  %v150 = vlaneseq
  %v151 = vand.u32 %v150, 127
  %v152 = vstv %s13
  %v153 = vadd.s32 %v151, %v152
  %s154 = sadd.s32 0, 1
  %s155 = smul.u32 %s154, 16
  %p156 = scmp.lt.s32.totalorder %s13, %s155
  %s157 = sadd.s32 %s13, 16
  %s158 = smul.u32 0, 16
  %p159 = scmp.gt.s32.totalorder %s157, %s158
  %p160 = pnand %p156, %p159
  %p161 = pneg %p160
  // Predicated region
  $region14: #{multiple_negatives_ranking_loss.3} parent=0 // pred_check
    _
  $region15: #{multiple_negatives_ranking_loss.3} parent=0 // pred_check_branch
    %163 = sbr.rel (%p160) target = $region17
  $region16: #{multiple_negatives_ranking_loss.3} parent=0 // pred_region
    %v164 = vlaneseq
    %v165 = vshrl.u32 %v164, 7
    %v166 = vadd.s32 %v165, 8
    %v167 = vstv %s158
    %v168 = vadd.s32 %v165, %v167
    %v169 = vadd.s32 %v166, %v167
    %v170 = vld [vmem:[#allocation5] sm:$0xff]
    %v171 = vld [vmem:[#allocation5 + $0x8] sm:$0xff]
    %vm172 = vcmp.eq.s32.totalorder %v153, %v168
    %vm173 = vcmp.eq.s32.totalorder %v153, %v169
    %v174 = vsel %vm172, %v142, 0.0
    %v175 = vsel %vm173, %v147, 0.0
    %vm176 = vcmask 130048
    %v177 = vsel %vm176, %v174, 0.0
    %178 = vadd.xlane.f32.xlu0 %v177
    %v179 = vpop.xlane.xlu0 %178
    %v180 = vsel %vm176, %v175, 0.0
    %181 = vadd.xlane.f32.xlu0 %v180
    %v182 = vpop.xlane.xlu0 %181
    %v183 = vadd.f32 %v170, %v179
    %v184 = vadd.f32 %v171, %v182
    %vm185 = vcmask 7168
    %186 = vst.msk [vmem:[#allocation5] sm:$0xff] %vm185, %v183
    %187 = vst.msk [vmem:[#allocation5 + $0x8] sm:$0xff] %vm185, %v184
  $region17: #{multiple_negatives_ranking_loss.3} parent=0 // pred_fallthru
    _
  %vm188 = vcmask 130048
  %v189 = vsel %vm188, %v142, -inf
  %190 = vmax.xlane.f32.xlu0 %v189
  %v191 = vpop.xlane.xlu0 %190
  %v192 = vsel %vm188, %v147, -inf
  %193 = vmax.xlane.f32.xlu0 %v192
  %v194 = vpop.xlane.xlu0 %193
  %vm195 = vcmp.eq.f32.partialorder %v142, %v191
  %vm196 = vcmp.eq.f32.partialorder %v147, %v194
  %v197 = vsel %vm195, %v153, 16
  %v198 = vsel %vm196, %v153, 16
  %v199 = vsel %vm188, %v197, 2147483647
  %v200 = vand.u32 %v199, 65535
  %v201 = vshra.s32 %v199, 16
  %v202 = vcvt.s32.f32 %v200
  %v203 = vcvt.s32.f32 %v201
  %204 = vmin.xlane.f32.xlu0 %v203
  %v205 = vpop.xlane.xlu0 %204
  %vm206 = vcmp.eq.f32.partialorder %v203, %v205
  %v207 = vsel %vm206, %v202, inf
  %208 = vmin.xlane.f32.xlu0 %v207
  %v209 = vpop.xlane.xlu0 %208
  %v210 = vcvt.f32.s32 %v209
  %v211 = vcvt.f32.s32 %v205
  %v212 = vshll.u32 %v211, 16
  %v213 = vadd.s32 %v212, %v210
  %v214 = vsel %vm188, %v198, 2147483647
  %v215 = vand.u32 %v214, 65535
  %v216 = vshra.s32 %v214, 16
  %v217 = vcvt.s32.f32 %v215
  %v218 = vcvt.s32.f32 %v216
  %219 = vmin.xlane.f32.xlu0 %v218
  %v220 = vpop.xlane.xlu0 %219
  %vm221 = vcmp.eq.f32.partialorder %v218, %v220
  %v222 = vsel %vm221, %v217, inf
  %223 = vmin.xlane.f32.xlu0 %v222
  %v224 = vpop.xlane.xlu0 %223
  %v225 = vcvt.f32.s32 %v224
  %v226 = vcvt.f32.s32 %v220
  %v227 = vshll.u32 %v226, 16
  %v228 = vadd.s32 %v227, %v225
  %v229 = vld [vmem:[#allocation3] sm:$0xff]
  %v230 = vld [vmem:[#allocation3 + $0x8] sm:$0xff]
  %v231 = vmax.f32 %v229, %v191
  %v232 = vmax.f32 %v230, %v194
  %v233 = vld [vmem:[#allocation4] sm:$0xff]
  %v234 = vld [vmem:[#allocation4 + $0x8] sm:$0xff]
  %v235 = vsub.f32 %v229, %v231
  %v236 = vsub.f32 %v230, %v232
  %v237 = vmul.f32 %v235, 1.442695
  %v238 = vpow.pop %v237
  %v239 = vmul.f32 %v236, 1.442695
  %v240 = vpow.pop %v239
  %v241 = vmul.f32 %v233, %v238
  %v242 = vmul.f32 %v234, %v240
  %244 = vset.pattern.permute.xlu0 0
  %245 = vperm.xlu0 %244, %v231
  %v246 = vpop.permute.xlu0 %245
  %249 = vset.pattern.permute.xlu0 0
  %250 = vperm.xlu0 %249, %v232
  %v251 = vpop.permute.xlu0 %250
  %v253 = vsub.f32 %v142, %v246
  %v254 = vsub.f32 %v147, %v251
  %v255 = vmul.f32 %v253, 1.442695
  %v256 = vpow.pop %v255
  %v257 = vmul.f32 %v254, 1.442695
  %v258 = vpow.pop %v257
  %v259 = vsel %vm188, %v256, 0.0
  %260 = vadd.xlane.f32.xlu0 %v259
  %v261 = vpop.xlane.xlu0 %260
  %v262 = vsel %vm188, %v258, 0.0
  %263 = vadd.xlane.f32.xlu0 %v262
  %v264 = vpop.xlane.xlu0 %263
  %v265 = vadd.f32 %v241, %v261
  %v266 = vadd.f32 %v242, %v264
  %vm267 = vcmask 7168
  %268 = vst.msk [vmem:[#allocation4] sm:$0xff] %vm267, %v265
  %269 = vst.msk [vmem:[#allocation4 + $0x8] sm:$0xff] %vm267, %v266
  %vm270 = vcmp.gt.f32.partialorder %v191, %v229
  %vm271 = vcmp.gt.f32.partialorder %v194, %v230
  %v272 = vld [vmem:[#allocation6] sm:$0xff]
  %v273 = vld [vmem:[#allocation6 + $0x8] sm:$0xff]
  %v274 = vsel %vm270, %v213, %v272
  %v275 = vsel %vm271, %v228, %v273
  %276 = vst.msk [vmem:[#allocation6] sm:$0xff] %vm267, %v274
  %277 = vst.msk [vmem:[#allocation6 + $0x8] sm:$0xff] %vm267, %v275
  %278 = vst.msk [vmem:[#allocation3] sm:$0xff] %vm267, %v231
  %279 = vst.msk [vmem:[#allocation3 + $0x8] sm:$0xff] %vm267, %v232
  // Predicated region
  $region18: #{multiple_negatives_ranking_loss.3} parent=0 // pred_check
    %p280 = pneg %p14
  $region19: #{multiple_negatives_ranking_loss.3} parent=0 // pred_check_branch
    %282 = sbr.rel (%p280) target = $region21
  $region20: #{multiple_negatives_ranking_loss.3} parent=0 // pred_region
    %v283 = vld [vmem:[#allocation3] sm:$0xff]
    %v284 = vld [vmem:[#allocation3 + $0x8] sm:$0xff]
    %v285 = vld [vmem:[#allocation4] sm:$0xff]
    %v286 = vld [vmem:[#allocation4 + $0x8] sm:$0xff]
    %v287 = vlog2.pop %v285
    %v288 = vmul.f32 %v287, 0.6931472
    %v289 = vlog2.pop %v286
    %v290 = vmul.f32 %v289, 0.6931472
    %v291 = vadd.f32 %v283, %v288
    %v292 = vadd.f32 %v284, %v290
    %v293 = vlaneseq
    %v294 = vshrl.u32 %v293, 7
    %v295 = vadd.s32 %v294, 8
    %v296 = vstv %s158
    %v297 = vadd.s32 %v294, %v296
    %v298 = vadd.s32 %v295, %v296
    %v299 = vld [vmem:[#allocation5] sm:$0xff]
    %v300 = vld [vmem:[#allocation5 + $0x8] sm:$0xff]
    %v301 = vsub.f32 %v291, %v299
    %v302 = vsub.f32 %v292, %v300
    %303 = vst.msk [vmem:[%s2] sm:$0xff] %vm267, %v301
    %304 = vst.msk [vmem:[%s2 + $0x8] sm:$0xff] %vm267, %v302
    %v305 = vld [vmem:[#allocation6] sm:$0xff]
    %v306 = vld [vmem:[#allocation6 + $0x8] sm:$0xff]
    %vm307 = vcmp.eq.s32.totalorder %v305, %v297
    %vm308 = vcmp.eq.s32.totalorder %v306, %v298
    %v309 = vsel %vm307, 1, 0
    %v310 = vsel %vm308, 1, 0
    %v311 = vcvt.s32.f32 %v309
    %v312 = vcvt.s32.f32 %v310
    %313 = vst.msk [vmem:[%s3] sm:$0xff] %vm267, %v311
    %314 = vst.msk [vmem:[%s3 + $0x8] sm:$0xff] %vm267, %v312
  $region21: #{multiple_negatives_ranking_loss.3} parent=0 // pred_fallthru
    _
  // Predicated region
  $region22: #{multiple_negatives_ranking_loss.3} parent=0 // pred_check
    _
  $region23: #{multiple_negatives_ranking_loss.3} parent=0 // pred_check_branch
    %316 = sbr.rel (0) target = $region25
  $region24: #{multiple_negatives_ranking_loss.3} parent=0 // pred_region
    _
  $region25: #{multiple_negatives_ranking_loss.3} parent=0 // pred_fallthru
    _
  // Predicated region
  $region26: #{multiple_negatives_ranking_loss.3} parent=0 // pred_check
    _
  $region27: #{multiple_negatives_ranking_loss.3} parent=0 // pred_check_branch
    %318 = sbr.rel (0) target = $region29
  $region28: #{multiple_negatives_ranking_loss.3} parent=0 // pred_region
    _
  $region29: #{multiple_negatives_ranking_loss.3} parent=0 // pred_fallthru
    _
  // Predicated region
  $region30: #{multiple_negatives_ranking_loss.3} parent=0 // pred_check
    _
  $region31: #{multiple_negatives_ranking_loss.3} parent=0 // pred_check_branch
    %320 = sbr.rel (0) target = $region33
  $region32: #{multiple_negatives_ranking_loss.3} parent=0 // pred_region
    _
  $region33: #{multiple_negatives_ranking_loss.3} parent=0 // pred_fallthru
    _
  // Predicated region
  $region34: #{multiple_negatives_ranking_loss.3} parent=0 // pred_check
    _
  $region35: #{multiple_negatives_ranking_loss.3} parent=0 // pred_check_branch
    %322 = sbr.rel (0) target = $region37
  $region36: #{multiple_negatives_ranking_loss.3} parent=0 // pred_region
    _
  $region37: #{multiple_negatives_ranking_loss.3} parent=0 // pred_fallthru
    _

</llo_original>
